<compile_context>
chip_gen: v7x
topology: tpu7x:2x2x1
jax: 0.10.0
libtpu: 0.0.40
codegen_flags: <defaults>
</compile_context>

<pallas_src>
import functools
import math

import jax
import jax.numpy as jnp
import numpy as np
from jax.experimental import pallas as pl
from jax.experimental.pallas import tpu as pltpu

_LANE_ANCHORS = 128                    # anchors packed per row
_ROW_WIDTH = 7 * _LANE_ANCHORS         # 896 lanes = 7 channels x 128 anchors
_MAX_ROWS_PER_TILE = 64                # 64 rows x 128 anchors = 8192 anchors/tile


def _round_up(x, m):
    return ((x + m - 1) // m) * m


def _decode_kernel(lab_ref, box_ref, scale_ref, shift_ref, isexp_ref, ch6_ref,
                   scat_ref, out_ref, *, dir_offset, dir_limit_offset, period):
    """Decode one (TR, 896) interleaved block (128 anchors x 7 channels / row).

    lab_ref:   (TR, 128)  per-anchor direction-bin labels (float)
    box_ref:   (TR, 896)  encoded residuals, anchor-major / channel-minor
    scale_ref: (TR, 896)  per-(anchor,channel) multiplicative term (from anchors)
    shift_ref: (TR, 896)  per-(anchor,channel) additive term (from anchors)
    isexp_ref: (1, 896)   1.0 on channels 3,4,5 (dx,dy,dz -> exp decode)
    ch6_ref:   (1, 896)   1.0 on channel 6 (yaw)
    scat_ref:  (128, 896) constant 0/1 scatter matrix anchor -> its ch-6 lane
    """
    box = box_ref[...].astype(jnp.float32)           # upcast in-kernel if bf16
    scale = scale_ref[...]
    shift = shift_ref[...]
    is_exp = isexp_ref[...] > 0.5                    # (1, 896) -> broadcast
    ch6 = ch6_ref[...]                               # (1, 896) -> broadcast

    # ResidualCoder.decode_torch, vectorized over the whole block:
    #   x/y/z/r channels: box * scale + shift   (scale = diag/diag/dza/1)
    #   dx/dy/dz channels: exp(box) * scale     (scale = dxa/dya/dza)
    base = jnp.where(is_exp, jnp.exp(box), box) * scale + shift

    # Scatter per-anchor labels onto the channel-6 lanes with one small MXU
    # matmul against a 0/1 matrix.  Labels are small integers, so this is
    # exact under any matmul precision; keep the `period` multiply in f32.
    lab6 = jnp.dot(lab_ref[...], scat_ref[...],
                   preferred_element_type=jnp.float32)       # (TR, 896)

    # limit_period(rg - dir_offset, dir_limit_offset, period) + dir_offset
    # + period * label, applied only on channel-6 lanes (ch6/lab6 are zero
    # elsewhere so all other channels pass through unchanged).
    val = base - dir_offset
    wrap = jnp.floor(val * (1.0 / period) + dir_limit_offset) * period
    out_ref[...] = (base + ch6 * (period * lab6 - wrap)).astype(out_ref.dtype)


def generate_predicted_boxes(cls_preds, box_preds, dir_preds, anchors, *,
                             dir_offset, dir_limit_offset, num_dir_bins):
    """Pallas equivalent of AnchorHeadSingle.generate_predicted_boxes.

    cls_preds:  (B, H, W, A_loc * num_classes)
    box_preds:  (B, H, W, A_loc * 7)
    dir_preds:  (B, H, W, A_loc * num_dir_bins)
    anchors:    (..., 7), reshapes to (A, 7) with A = H*W*A_loc
    """
    B = box_preds.shape[0]
    code_size = anchors.shape[-1]
    assert code_size == 7, "standard ResidualCoder (code_size=7) assumed"
    anchors_flat = anchors.reshape(-1, code_size).astype(jnp.float32)   # (A, 7)
    A = anchors_flat.shape[0]

    # cls predictions are passed through (module does cls_preds.float()).
    batch_cls_preds = cls_preds.reshape(B, A, -1).astype(jnp.float32)

    box_bac = box_preds.reshape(B, A, code_size)          # free view, native dtype
    dir_bad = dir_preds.reshape(B, A, -1)                 # free view
    period = 2.0 * math.pi / num_dir_bins

    # Compact per-anchor dir labels (tiny XLA pass; == one compare for 2 bins).
    labels = jnp.argmax(dir_bad, axis=-1).astype(jnp.float32)        # (B, A)

    # ---- pad anchor count so rows are >=8 and a multiple of 128 lanes ----
    pad = (-A) % _LANE_ANCHORS
    rows = (A + pad) // _LANE_ANCHORS
    if rows < _MAX_ROWS_PER_TILE and rows % 8 != 0:
        rows = _round_up(rows, 8)
        pad = rows * _LANE_ANCHORS - A
    A_pad = A + pad
    if pad:
        box_bac = jnp.pad(box_bac, ((0, 0), (0, pad), (0, 0)))
        labels = jnp.pad(labels, ((0, 0), (0, pad)))
        anchors_flat = jnp.pad(anchors_flat, ((0, pad), (0, 0)),
                               constant_values=1.0)

    # ---- per-(anchor, channel) decode constants (computed once, reused) ----
    xa, ya, za, dxa, dya, dza, ra = [anchors_flat[:, i:i + 1] for i in range(7)]
    diag = jnp.sqrt(dxa * dxa + dya * dya)
    one = jnp.ones_like(ra)
    zero = jnp.zeros_like(ra)
    scale = jnp.concatenate([diag, diag, dza, dxa, dya, dza, one], axis=-1)
    shift = jnp.concatenate([xa, ya, za, zero, zero, zero, ra], axis=-1)
    scale = scale.reshape(rows, _ROW_WIDTH)
    shift = shift.reshape(rows, _ROW_WIDTH)

    chan = np.arange(_ROW_WIDTH) % 7
    is_exp = jnp.asarray(((chan >= 3) & (chan <= 5)).astype(np.float32)[None])
    ch6 = jnp.asarray((chan == 6).astype(np.float32)[None])

    scat_np = np.zeros((_LANE_ANCHORS, _ROW_WIDTH), np.float32)
    a_idx = np.arange(_LANE_ANCHORS)
    scat_np[a_idx, 7 * a_idx + 6] = 1.0
    scat = jnp.asarray(scat_np)

    box_rows = box_bac.reshape(B, rows, _ROW_WIDTH)         # free view
    lab_rows = labels.reshape(B, rows, _LANE_ANCHORS)       # free view

    tr = rows if rows <= _MAX_ROWS_PER_TILE else _MAX_ROWS_PER_TILE
    grid_r = pl.cdiv(rows, tr)

    kern = functools.partial(
        _decode_kernel,
        dir_offset=float(dir_offset),
        dir_limit_offset=float(dir_limit_offset),
        period=float(period))

    out = pl.pallas_call(
        kern,
        out_shape=jax.ShapeDtypeStruct((B, rows, _ROW_WIDTH), jnp.float32),
        grid=(grid_r, B),
        in_specs=[
            pl.BlockSpec((None, tr, _LANE_ANCHORS), lambda r, b: (b, r, 0)),
            pl.BlockSpec((None, tr, _ROW_WIDTH), lambda r, b: (b, r, 0)),
            pl.BlockSpec((tr, _ROW_WIDTH), lambda r, b: (r, 0)),
            pl.BlockSpec((tr, _ROW_WIDTH), lambda r, b: (r, 0)),
            pl.BlockSpec((1, _ROW_WIDTH), lambda r, b: (0, 0)),
            pl.BlockSpec((1, _ROW_WIDTH), lambda r, b: (0, 0)),
            pl.BlockSpec((_LANE_ANCHORS, _ROW_WIDTH), lambda r, b: (0, 0)),
        ],
        out_specs=pl.BlockSpec((None, tr, _ROW_WIDTH), lambda r, b: (b, r, 0)),
        # VMEM use is ~3 MB with double buffering at tr=64, well under every
        # generation's default scoped-VMEM limit -> no vmem_limit_bytes needed.
        compiler_params=pltpu.CompilerParams(
            dimension_semantics=("parallel", "parallel")),
    )(lab_rows, box_rows, scale, shift, is_exp, ch6, scat)

    batch_box_preds = out.reshape(B, A_pad, code_size)      # free view
    if pad:
        batch_box_preds = batch_box_preds[:, :A, :]

    return {"batch_cls_preds": batch_cls_preds,
            "batch_box_preds": batch_box_preds,
            "cls_preds_normalized": False}


def _reference_decode(box_bac, anchors_flat, dir_bad, dir_offset,
                      dir_limit_offset, num_dir_bins):
    """Pure-numpy reference of decode_torch + dir adjustment."""
    anc = np.broadcast_to(anchors_flat[None], box_bac.shape)
    xa, ya, za, dxa, dya, dza, ra = np.split(anc, 7, axis=-1)
    xt, yt, zt, dxt, dyt, dzt, rt = np.split(box_bac, 7, axis=-1)
    diag = np.sqrt(dxa ** 2 + dya ** 2)
    xg = xt * diag + xa
    yg = yt * diag + ya
    zg = zt * dza + za
    dxg = np.exp(dxt) * dxa
    dyg = np.exp(dyt) * dya
    dzg = np.exp(dzt) * dza
    rg = rt + ra
    out = np.concatenate([xg, yg, zg, dxg, dyg, dzg, rg], axis=-1)
    dir_labels = np.argmax(dir_bad, axis=-1)
    period = 2 * np.pi / num_dir_bins
    val = out[..., 6] - dir_offset
    dir_rot = val - np.floor(val / period + dir_limit_offset) * period
    out[..., 6] = dir_rot + dir_offset + period * dir_labels
    return out


if __name__ == "__main__":
    key = jax.random.PRNGKey(0)
    B, H, W = 2, 16, 16
    num_classes = 3
    anchors_per_loc = 2          # one size, two rotations
    num_dir_bins = 2
    dir_offset = float(np.pi / 4)
    dir_limit_offset = 0.0

    A = H * W * anchors_per_loc  # 512 anchors per sample

    k1, k2, k3 = jax.random.split(key, 3)
    cls_preds = jax.random.normal(k1, (B, H, W, anchors_per_loc * num_classes),
                                  dtype=jnp.float32)
    box_preds = 0.1 * jax.random.normal(k2, (B, H, W, anchors_per_loc * 7),
                                        dtype=jnp.float32)
    dir_pred = jax.random.normal(k3, (B, H, W, anchors_per_loc * num_dir_bins),
                                 dtype=jnp.float32)

    # Deterministic synthetic anchors (what anchor_generator.get_anchors gives):
    # centers on a 0.5 m grid, fixed car-sized boxes, rotations {0, pi/2}.
    ys = (jnp.arange(H, dtype=jnp.float32) + 0.5) * 0.5
    xs = (jnp.arange(W, dtype=jnp.float32) + 0.5) * 0.5
    yy, xx = jnp.meshgrid(ys, xs, indexing="ij")                 # (H, W)
    rots = jnp.array([0.0, np.pi / 2], dtype=jnp.float32)
    cx = jnp.broadcast_to(xx[:, :, None], (H, W, anchors_per_loc))
    cy = jnp.broadcast_to(yy[:, :, None], (H, W, anchors_per_loc))
    cz = jnp.full((H, W, anchors_per_loc), -1.0, dtype=jnp.float32)
    dx = jnp.full((H, W, anchors_per_loc), 3.9, dtype=jnp.float32)
    dy = jnp.full((H, W, anchors_per_loc), 1.6, dtype=jnp.float32)
    dz = jnp.full((H, W, anchors_per_loc), 1.56, dtype=jnp.float32)
    rr = jnp.broadcast_to(rots[None, None, :], (H, W, anchors_per_loc))
    anchors = jnp.stack([cx, cy, cz, dx, dy, dz, rr], axis=-1)   # (H, W, 2, 7)

    out = generate_predicted_boxes(
        cls_preds, box_preds, dir_pred, anchors,
        dir_offset=dir_offset, dir_limit_offset=dir_limit_offset,
        num_dir_bins=num_dir_bins)
    jax.block_until_ready(out["batch_box_preds"])

    # sanity check against a pure-numpy reference of the same math
    ref = _reference_decode(
        np.asarray(box_preds).reshape(B, A, 7),
        np.asarray(anchors).reshape(A, 7),
        np.asarray(dir_pred).reshape(B, A, num_dir_bins),
        dir_offset, dir_limit_offset, num_dir_bins)
    np.testing.assert_allclose(np.asarray(out["batch_box_preds"]), ref,
                               rtol=1e-5, atol=1e-5)
    assert out["batch_box_preds"].shape == (B, A, 7)
    assert out["batch_cls_preds"].shape == (B, A, num_classes)
    assert out["cls_preds_normalized"] is False

    print("KERNEL_OK")
</pallas_src>

<mosaic_0001>
module attributes {stable_mosaic.version = 11 : i64} {
  func.func @_decode_kernel(%arg0: i32, %arg1: i32, %arg2: memref<1x8x128xf32, #tpu.memory_space<vmem>>, %arg3: memref<1x8x896xf32, #tpu.memory_space<vmem>>, %arg4: memref<8x896xf32, #tpu.memory_space<vmem>>, %arg5: memref<8x896xf32, #tpu.memory_space<vmem>>, %arg6: memref<1x896xf32, #tpu.memory_space<vmem>>, %arg7: memref<1x896xf32, #tpu.memory_space<vmem>>, %arg8: memref<128x896xf32, #tpu.memory_space<vmem>>, %arg9: memref<1x8x896xf32, #tpu.memory_space<vmem>>) attributes {dimension_semantics = [#tpu.dimension_semantics<parallel>, #tpu.dimension_semantics<parallel>], iteration_bounds = array<i64: 1, 2>, scalar_prefetch = 0 : i64, scratch_operands = 0 : i64, tpu.core_type = #tpu.core_type<tc>, window_params = [{transform_indices = @transform_0, window_bounds = array<i64: 1, 8, 128>}, {transform_indices = @transform_1, window_bounds = array<i64: 1, 8, 896>}, {transform_indices = @transform_2, window_bounds = array<i64: 8, 896>}, {transform_indices = @transform_3, window_bounds = array<i64: 8, 896>}, {pipeline_mode = #tpu.pipeline_mode<synchronous>, transform_indices = @transform_4, window_bounds = array<i64: 1, 896>}, {pipeline_mode = #tpu.pipeline_mode<synchronous>, transform_indices = @transform_5, window_bounds = array<i64: 1, 896>}, {pipeline_mode = #tpu.pipeline_mode<synchronous>, transform_indices = @transform_6, window_bounds = array<i64: 128, 896>}, {transform_indices = @transform_7, window_bounds = array<i64: 1, 8, 896>}]} {
    %c0 = arith.constant 0 : index
    %c0_0 = arith.constant 0 : index
    %c0_1 = arith.constant 0 : index
    %0 = vector.load %arg3[%c0, %c0_0, %c0_1] : memref<1x8x896xf32, #tpu.memory_space<vmem>>, vector<1x8x896xf32>
    %1 = vector.shape_cast %0 : vector<1x8x896xf32> to vector<8x896xf32>
    %c0_2 = arith.constant 0 : index
    %c0_3 = arith.constant 0 : index
    %2 = vector.load %arg4[%c0_2, %c0_3] : memref<8x896xf32, #tpu.memory_space<vmem>>, vector<8x896xf32>
    %c0_4 = arith.constant 0 : index
    %c0_5 = arith.constant 0 : index
    %3 = vector.load %arg5[%c0_4, %c0_5] : memref<8x896xf32, #tpu.memory_space<vmem>>, vector<8x896xf32>
    %c0_6 = arith.constant 0 : index
    %c0_7 = arith.constant 0 : index
    %4 = vector.load %arg6[%c0_6, %c0_7] : memref<1x896xf32, #tpu.memory_space<vmem>>, vector<1x896xf32>
    %cst = arith.constant 5.000000e-01 : f32
    %5 = vector.broadcast %cst : f32 to vector<1x896xf32>
    %6 = arith.cmpf ogt, %4, %5 : vector<1x896xf32>
    %c0_8 = arith.constant 0 : index
    %c0_9 = arith.constant 0 : index
    %7 = vector.load %arg7[%c0_8, %c0_9] : memref<1x896xf32, #tpu.memory_space<vmem>>, vector<1x896xf32>
    %8 = math.exp %1 : vector<8x896xf32>
    %9 = vector.shape_cast %6 : vector<1x896xi1> to vector<1x896xi1>
    %10 = vector.broadcast %9 : vector<1x896xi1> to vector<8x896xi1>
    %11 = arith.select %10, %8, %1 : vector<8x896xi1>, vector<8x896xf32>
    %12 = arith.mulf %11, %2 : vector<8x896xf32>
    %13 = arith.addf %12, %3 : vector<8x896xf32>
    %c0_10 = arith.constant 0 : index
    %c0_11 = arith.constant 0 : index
    %c0_12 = arith.constant 0 : index
    %14 = vector.load %arg2[%c0_10, %c0_11, %c0_12] : memref<1x8x128xf32, #tpu.memory_space<vmem>>, vector<1x8x128xf32>
    %15 = vector.shape_cast %14 : vector<1x8x128xf32> to vector<8x128xf32>
    %c0_13 = arith.constant 0 : index
    %c0_14 = arith.constant 0 : index
    %16 = vector.load %arg8[%c0_13, %c0_14] : memref<128x896xf32, #tpu.memory_space<vmem>>, vector<128x896xf32>
    %cst_15 = arith.constant dense<0.000000e+00> : vector<8x896xf32>
    %17 = tpu.matmul %15, %16, %cst_15 {dimension_numbers = #tpu.dot_dimension_numbers<[1], [0], [0], [1], [0, 0, 1, 1], [], []>} : vector<8x128xf32>, vector<128x896xf32>, vector<8x896xf32> -> vector<8x896xf32>
    %cst_16 = arith.constant 0.785398185 : f32
    %18 = vector.broadcast %cst_16 : f32 to vector<8x896xf32>
    %19 = arith.subf %13, %18 : vector<8x896xf32>
    %cst_17 = arith.constant 0.318309873 : f32
    %20 = vector.broadcast %cst_17 : f32 to vector<8x896xf32>
    %21 = arith.mulf %19, %20 : vector<8x896xf32>
    %cst_18 = arith.constant 0.000000e+00 : f32
    %22 = vector.broadcast %cst_18 : f32 to vector<8x896xf32>
    %23 = arith.addf %21, %22 : vector<8x896xf32>
    %24 = math.floor %23 : vector<8x896xf32>
    %cst_19 = arith.constant 3.14159274 : f32
    %25 = vector.broadcast %cst_19 : f32 to vector<8x896xf32>
    %26 = arith.mulf %24, %25 : vector<8x896xf32>
    %cst_20 = arith.constant 3.14159274 : f32
    %27 = vector.broadcast %cst_20 : f32 to vector<8x896xf32>
    %28 = arith.mulf %27, %17 : vector<8x896xf32>
    %29 = arith.subf %28, %26 : vector<8x896xf32>
    %30 = vector.broadcast %7 : vector<1x896xf32> to vector<8x896xf32>
    %31 = arith.mulf %30, %29 : vector<8x896xf32>
    %32 = arith.addf %13, %31 : vector<8x896xf32>
    %c0_21 = arith.constant 0 : index
    %c0_22 = arith.constant 0 : index
    %c0_23 = arith.constant 0 : index
    %33 = vector.load %arg9[%c0_21, %c0_22, %c0_23] : memref<1x8x896xf32, #tpu.memory_space<vmem>>, vector<1x8x896xf32>
    %34 = vector.shape_cast %33 : vector<1x8x896xf32> to vector<8x896xf32>
    %35 = vector.shape_cast %32 : vector<8x896xf32> to vector<1x8x896xf32>
    tpu.vector_store %arg9[%c0_21, %c0_22, %c0_23], %35 {strides = array<i32>} : memref<1x8x896xf32, #tpu.memory_space<vmem>>, vector<1x8x896xf32>,
    return
  }
  func.func @transform_0(%arg0: i32, %arg1: i32) -> (i32, i32, i32) {
    %c0_i32 = arith.constant 0 : i32
    %c0_i32_0 = arith.constant 0 : i32
    return %arg1, %arg0, %c0_i32 : i32, i32, i32
  }
  func.func @transform_1(%arg0: i32, %arg1: i32) -> (i32, i32, i32) {
    %c0_i32 = arith.constant 0 : i32
    %c0_i32_0 = arith.constant 0 : i32
    return %arg1, %arg0, %c0_i32 : i32, i32, i32
  }
  func.func @transform_2(%arg0: i32, %arg1: i32) -> (i32, i32) {
    %c0_i32 = arith.constant 0 : i32
    %c0_i32_0 = arith.constant 0 : i32
    return %arg0, %c0_i32 : i32, i32
  }
  func.func @transform_3(%arg0: i32, %arg1: i32) -> (i32, i32) {
    %c0_i32 = arith.constant 0 : i32
    %c0_i32_0 = arith.constant 0 : i32
    return %arg0, %c0_i32 : i32, i32
  }
  func.func @transform_4(%arg0: i32, %arg1: i32) -> (i32, i32) {
    %c0_i32 = arith.constant 0 : i32
    %c0_i32_0 = arith.constant 0 : i32
    %c0_i32_1 = arith.constant 0 : i32
    return %c0_i32, %c0_i32_0 : i32, i32
  }
  func.func @transform_5(%arg0: i32, %arg1: i32) -> (i32, i32) {
    %c0_i32 = arith.constant 0 : i32
    %c0_i32_0 = arith.constant 0 : i32
    %c0_i32_1 = arith.constant 0 : i32
    return %c0_i32, %c0_i32_0 : i32, i32
  }
  func.func @transform_6(%arg0: i32, %arg1: i32) -> (i32, i32) {
    %c0_i32 = arith.constant 0 : i32
    %c0_i32_0 = arith.constant 0 : i32
    %c0_i32_1 = arith.constant 0 : i32
    return %c0_i32, %c0_i32_0 : i32, i32
  }
  func.func @transform_7(%arg0: i32, %arg1: i32) -> (i32, i32, i32) {
    %c0_i32 = arith.constant 0 : i32
    %c0_i32_0 = arith.constant 0 : i32
    return %arg1, %arg0, %c0_i32 : i32, i32, i32
  }
}

</mosaic_0001>

<llo_original>
// kernel: tpu_custom_call.1
$region0: #{tpu_custom_call.1}
  #allocation0 [shape = 'u32[]', space=smem, size = 0x4, offset = 0x4, fixed_abs, tag = 'smem constant byte address 0x4 - core index']
  #allocation1 [shape = 'u32[144,128]{1,0:T(1,128)}', space=vmem, size = 0x12000, scoped, tag = 'internal scratch']
  %s0 = inlined_call_operand.hbm [shape: f32[2,8,128], index: 0, kind: input, shape index: {}]
  %s1 = inlined_call_operand.hbm [shape: f32[2,8,896], index: 1, kind: input, shape index: {}]
  %s2 = inlined_call_operand.hbm [shape: f32[8,896], index: 2, kind: input, shape index: {}]
  %s3 = inlined_call_operand.hbm [shape: f32[8,896], index: 3, kind: input, shape index: {}]
  %s4 = inlined_call_operand.vmem [shape: f32[1,896], index: 4, kind: input, shape index: {}]
  %s5 = inlined_call_operand.vmem [shape: f32[1,896], index: 5, kind: input, shape index: {}]
  %s6 = inlined_call_operand.hbm [shape: f32[128,896], index: 6, kind: input, shape index: {}]
  %s7 = inlined_call_operand.hbm [shape: f32[2,8,896], index: 7, kind: output, shape index: {}]
  %s8 = sld [smem:[#allocation0]]
  $region81: #{tpu_custom_call.1} parent=0
    _
  %s10 = ssub.s32 1, %s8
  %s11 = scalar_select 0, %s10, %s8
  $region1: #{tpu_custom_call.1} parent=0
    #allocation2 [shape = 'u8[8192]{0}', space=vmem, size = 0x2000, scoped, tag = 'input window, operand 0']
    #allocation3 [shape = 's32[2]{0}', space=sflag, size = 0x8, scoped, tag = 'scoped memory for tpu_custom_call.1']
    #allocation4 [shape = 's32[2]{0}', space=sflag, size = 0x8, scoped, tag = 'scoped memory for tpu_custom_call.1']
    #allocation5 [shape = 'u8[57344]{0}', space=vmem, size = 0xe000, scoped, tag = 'input window, operand 1']
    #allocation6 [shape = 's32[2]{0}', space=sflag, size = 0x8, scoped, tag = 'scoped memory for tpu_custom_call.1']
    #allocation7 [shape = 'u8[28672]{0}', space=vmem, size = 0x7000, scoped, tag = 'input window, operand 2, single buffered']
    #allocation8 [shape = 'u8[28672]{0}', space=vmem, size = 0x7000, scoped, tag = 'input window, operand 3, single buffered']
    #allocation9 [shape = 's32[1]{0}', space=sflag, size = 0x4, scoped, tag = 'scoped memory for tpu_custom_call.1']
    #allocation10 [shape = 'u8[458752]{0}', space=vmem, size = 0x70000, scoped, tag = 'input window, operand 6, single buffered']
    #allocation11 [shape = 'u8[57344]{0}', space=vmem, size = 0xe000, scoped, tag = 'output window, operand 0']
    %12 = vsyncpa [#allocation3], 0
    %s13 = scalar_lea.sflag [#allocation3], 1
    %14 = vsyncpa %s13, 0
    %15 = vsyncpa [#allocation6], 0
    %s16 = scalar_lea.sflag [#allocation6], 1
    %17 = vsyncpa %s16, 0
    %18 = vsyncpa [#allocation9], 0
    %19 = vsyncpa [#allocation4], 0
    %s20 = scalar_lea.sflag [#allocation4], 1
    %21 = vsyncpa %s20, 0
    loop: start=0, step=1, limit=4
    $region2: #{tpu_custom_call.1} parent=1 // loop_pre_header
      _
    $region3: #{tpu_custom_call.1} parent=1 // loop_header
      %s23 = sphi 0, %s27
      %p24 = scmp.ge.s32.totalorder %s23, 4
      %s30 = sphi 0, %s42
      %s31 = sphi 0, %s38
      %s32 = sphi 0, %s30
      %s33 = sphi 0, %s31
      %s34 = sphi 0, %s32
      %s35 = sphi 0, %s33
      %s47 = sphi 0, %s49
      %s50 = sphi 0, %s47
      %s51 = sphi 0, %s50
      %s67 = sphi 0, %s51
      %s75 = sphi 0, %s77
      %s78 = sphi 0, %s75
      %s79 = sphi 0, %s78
      %s95 = sphi 0, %s79
      %s101 = sphi 0, %s103
      %s104 = sphi 0, %s101
      %s105 = sphi 0, %s104
      %s121 = sphi 0, %s105
      %s127 = sphi 0, %s129
      %s130 = sphi 0, %s127
      %s131 = sphi 0, %s130
      %s147 = sphi 0, %s131
      %s151 = sphi 0, %s151
      %s153 = sphi 0, %s151
      %s154 = sphi 0, %s153
      %s168 = sphi 0, %s154
      %s172 = sphi 0, %s172
      %s174 = sphi 0, %s172
      %s175 = sphi 0, %s174
      %s189 = sphi 0, %s175
      %s193 = sphi 0, %s193
      %s195 = sphi 0, %s193
      %s196 = sphi 0, %s195
      %s210 = sphi 0, %s196
      %s218 = sphi 0, %s220
      %s221 = sphi 0, %s218
      %s222 = sphi 0, %s221
      %s238 = sphi 0, %s222
    $region4: #{tpu_custom_call.1} parent=1 // loop_header_branch
      %26 = sbr.rel (%p24) target = $region8
    $region5: #{tpu_custom_call.1} parent=1 // loop_body
      %s28 = ssub.s32 %s23, 1
      %s29 = ssub.s32 %s23, 2
      %s36 = sadd.s32 1, %s31
      %p37 = scmp.ge.s32.totalorder %s36, 2
      %s38 = scalar_select %p37, 0, %s36
      %s39 = sadd.s32 1, %s30
      %s40 = scalar_select %p37, %s39, %s30
      %p41 = scmp.ge.s32.totalorder %s40, 1
      %s42 = scalar_select %p41, 0, %s40
      %s43 = ssub.s32 %s31, %s38
      %s44 = ssub.s32 %s30, %s42
      %s45 = sor.u32 %s43, %s44
      %p46 = scmp.eq.s32.totalorder %s45, 0
      %s48 = sadd.s32 %s47, 1
      %s49 = scalar_select %p46, %s47, %s48
      %p52 = pneg %p46
      %p53 = scmp.eq.s32.totalorder %s23, 1
      %p54 = por %p52, %p53
      %p55 = scmp.ne.s32.totalorder %s47, %s50
      %p56 = scmp.eq.s32.totalorder %s23, 0
      %p57 = por %p55, %p56
      %p58 = scmp.ne.s32.totalorder %s47, %s50
      %p59 = scmp.eq.s32.totalorder %s28, 1
      %p60 = por %p58, %p59
      %p61 = scmp.ne.s32.totalorder %s50, %s51
      %p62 = scmp.eq.s32.totalorder %s28, 0
      %p63 = por %p61, %p62
      %p64 = scmp.ne.s32.totalorder %s50, %s51
      %p65 = scmp.eq.s32.totalorder %s29, 1
      %p66 = por %p64, %p65
      %p68 = scmp.ne.s32.totalorder %s51, %s67
      %p69 = scmp.eq.s32.totalorder %s29, 0
      %p70 = por %p68, %p69
      %s71 = ssub.s32 %s31, %s38
      %s72 = ssub.s32 %s30, %s42
      %s73 = sor.u32 %s71, %s72
      %p74 = scmp.eq.s32.totalorder %s73, 0
      %s76 = sadd.s32 %s75, 1
      %s77 = scalar_select %p74, %s75, %s76
      %p80 = pneg %p74
      %p81 = scmp.eq.s32.totalorder %s23, 1
      %p82 = por %p80, %p81
      %p83 = scmp.ne.s32.totalorder %s75, %s78
      %p84 = scmp.eq.s32.totalorder %s23, 0
      %p85 = por %p83, %p84
      %p86 = scmp.ne.s32.totalorder %s75, %s78
      %p87 = scmp.eq.s32.totalorder %s28, 1
      %p88 = por %p86, %p87
      %p89 = scmp.ne.s32.totalorder %s78, %s79
      %p90 = scmp.eq.s32.totalorder %s28, 0
      %p91 = por %p89, %p90
      %p92 = scmp.ne.s32.totalorder %s78, %s79
      %p93 = scmp.eq.s32.totalorder %s29, 1
      %p94 = por %p92, %p93
      %p96 = scmp.ne.s32.totalorder %s79, %s95
      %p97 = scmp.eq.s32.totalorder %s29, 0
      %p98 = por %p96, %p97
      %s99 = ssub.s32 %s30, %s42
      %p100 = scmp.eq.s32.totalorder %s99, 0
      %s102 = sadd.s32 %s101, 1
      %s103 = scalar_select %p100, %s101, %s102
      %p106 = pneg %p100
      %p107 = scmp.eq.s32.totalorder %s23, 1
      %p108 = por %p106, %p107
      %p109 = scmp.ne.s32.totalorder %s101, %s104
      %p110 = scmp.eq.s32.totalorder %s23, 0
      %p111 = por %p109, %p110
      %p112 = scmp.ne.s32.totalorder %s101, %s104
      %p113 = scmp.eq.s32.totalorder %s28, 1
      %p114 = por %p112, %p113
      %p115 = scmp.ne.s32.totalorder %s104, %s105
      %p116 = scmp.eq.s32.totalorder %s28, 0
      %p117 = por %p115, %p116
      %p118 = scmp.ne.s32.totalorder %s104, %s105
      %p119 = scmp.eq.s32.totalorder %s29, 1
      %p120 = por %p118, %p119
      %p122 = scmp.ne.s32.totalorder %s105, %s121
      %p123 = scmp.eq.s32.totalorder %s29, 0
      %p124 = por %p122, %p123
      %s125 = ssub.s32 %s30, %s42
      %p126 = scmp.eq.s32.totalorder %s125, 0
      %s128 = sadd.s32 %s127, 1
      %s129 = scalar_select %p126, %s127, %s128
      %p132 = pneg %p126
      %p133 = scmp.eq.s32.totalorder %s23, 1
      %p134 = por %p132, %p133
      %p135 = scmp.ne.s32.totalorder %s127, %s130
      %p136 = scmp.eq.s32.totalorder %s23, 0
      %p137 = por %p135, %p136
      %p138 = scmp.ne.s32.totalorder %s127, %s130
      %p139 = scmp.eq.s32.totalorder %s28, 1
      %p140 = por %p138, %p139
      %p141 = scmp.ne.s32.totalorder %s130, %s131
      %p142 = scmp.eq.s32.totalorder %s28, 0
      %p143 = por %p141, %p142
      %p144 = scmp.ne.s32.totalorder %s130, %s131
      %p145 = scmp.eq.s32.totalorder %s29, 1
      %p146 = por %p144, %p145
      %p148 = scmp.ne.s32.totalorder %s131, %s147
      %p149 = scmp.eq.s32.totalorder %s29, 0
      %p150 = por %p148, %p149
      %s152 = sadd.s32 %s151, 1
      %p155 = scmp.eq.s32.totalorder %s23, 1
      %p156 = scmp.ne.s32.totalorder %s151, %s153
      %p157 = scmp.eq.s32.totalorder %s23, 0
      %p158 = por %p156, %p157
      %p159 = scmp.ne.s32.totalorder %s151, %s153
      %p160 = scmp.eq.s32.totalorder %s28, 1
      %p161 = por %p159, %p160
      %p162 = scmp.ne.s32.totalorder %s153, %s154
      %p163 = scmp.eq.s32.totalorder %s28, 0
      %p164 = por %p162, %p163
      %p165 = scmp.ne.s32.totalorder %s153, %s154
      %p166 = scmp.eq.s32.totalorder %s29, 1
      %p167 = por %p165, %p166
      %p169 = scmp.ne.s32.totalorder %s154, %s168
      %p170 = scmp.eq.s32.totalorder %s29, 0
      %p171 = por %p169, %p170
      %s173 = sadd.s32 %s172, 1
      %p176 = scmp.eq.s32.totalorder %s23, 1
      %p177 = scmp.ne.s32.totalorder %s172, %s174
      %p178 = scmp.eq.s32.totalorder %s23, 0
      %p179 = por %p177, %p178
      %p180 = scmp.ne.s32.totalorder %s172, %s174
      %p181 = scmp.eq.s32.totalorder %s28, 1
      %p182 = por %p180, %p181
      %p183 = scmp.ne.s32.totalorder %s174, %s175
      %p184 = scmp.eq.s32.totalorder %s28, 0
      %p185 = por %p183, %p184
      %p186 = scmp.ne.s32.totalorder %s174, %s175
      %p187 = scmp.eq.s32.totalorder %s29, 1
      %p188 = por %p186, %p187
      %p190 = scmp.ne.s32.totalorder %s175, %s189
      %p191 = scmp.eq.s32.totalorder %s29, 0
      %p192 = por %p190, %p191
      %s194 = sadd.s32 %s193, 1
      %p197 = scmp.eq.s32.totalorder %s23, 1
      %p198 = scmp.ne.s32.totalorder %s193, %s195
      %p199 = scmp.eq.s32.totalorder %s23, 0
      %p200 = por %p198, %p199
      %p201 = scmp.ne.s32.totalorder %s193, %s195
      %p202 = scmp.eq.s32.totalorder %s28, 1
      %p203 = por %p201, %p202
      %p204 = scmp.ne.s32.totalorder %s195, %s196
      %p205 = scmp.eq.s32.totalorder %s28, 0
      %p206 = por %p204, %p205
      %p207 = scmp.ne.s32.totalorder %s195, %s196
      %p208 = scmp.eq.s32.totalorder %s29, 1
      %p209 = por %p207, %p208
      %p211 = scmp.ne.s32.totalorder %s196, %s210
      %p212 = scmp.eq.s32.totalorder %s29, 0
      %p213 = por %p211, %p212
      %s214 = ssub.s32 %s31, %s38
      %s215 = ssub.s32 %s30, %s42
      %s216 = sor.u32 %s214, %s215
      %p217 = scmp.eq.s32.totalorder %s216, 0
      %s219 = sadd.s32 %s218, 1
      %s220 = scalar_select %p217, %s218, %s219
      %p223 = pneg %p217
      %p224 = scmp.eq.s32.totalorder %s23, 1
      %p225 = por %p223, %p224
      %p226 = scmp.ne.s32.totalorder %s218, %s221
      %p227 = scmp.eq.s32.totalorder %s23, 0
      %p228 = por %p226, %p227
      %p229 = scmp.ne.s32.totalorder %s218, %s221
      %p230 = scmp.eq.s32.totalorder %s28, 1
      %p231 = por %p229, %p230
      %p232 = scmp.ne.s32.totalorder %s221, %s222
      %p233 = scmp.eq.s32.totalorder %s28, 0
      %p234 = por %p232, %p233
      %p235 = scmp.ne.s32.totalorder %s221, %s222
      %p236 = scmp.eq.s32.totalorder %s29, 1
      %p237 = por %p235, %p236
      %p239 = scmp.ne.s32.totalorder %s222, %s238
      %p240 = scmp.eq.s32.totalorder %s29, 0
      %p241 = por %p239, %p240
      %p242 = scmp.le.s32.totalorder 1, %s23
      %p243 = scmp.lt.s32.totalorder %s23, 3
      %p244 = pnand %p242, %p243
      %p245 = pneg %p244
      // Predicated region
      $region9: #{tpu_custom_call.1} parent=5 // pred_check
        _
      $region10: #{tpu_custom_call.1} parent=5 // pred_check_branch
        %247 = sbr.rel (%p244) target = $region12
      $region11: #{tpu_custom_call.1} parent=5 // pred_region
        %s248 = ssub.s32 %s23, 1
        // Predicated region
        $region13: #{tpu_custom_call.1} parent=11 // pred_check
          %p249 = pneg %p117
        $region14: #{tpu_custom_call.1} parent=11 // pred_check_branch
          %251 = sbr.rel (%p249) target = $region16
        $region15: #{tpu_custom_call.1} parent=11 // pred_region
          %s253 = ssub.s32 896, 896
          %254 = vsyncadd [#allocation6], %s253
          %s255 = smul.addr %s32, 7
          %s256 = smul.addr %s255, 128
          %s257 = scalar_lea.hbm %s2, %s256
          %s259 = sshll.u32 [#allocation7], 4
          %s260 = int_to_ptr.vmem [resolvable:$true] %s259
          %262 = dma.hbm_to_vmem [thread:$0]  %s257, 896, %s260, [#allocation6]
        $region16: #{tpu_custom_call.1} parent=11 // pred_fallthru
          _
        // Predicated region
        $region17: #{tpu_custom_call.1} parent=11 // pred_check
          %p263 = pneg %p143
        $region18: #{tpu_custom_call.1} parent=11 // pred_check_branch
          %265 = sbr.rel (%p263) target = $region20
        $region19: #{tpu_custom_call.1} parent=11 // pred_region
          %s267 = ssub.s32 896, 896
          %268 = vsyncadd [#allocation9], %s267
          %s269 = smul.addr %s32, 7
          %s270 = smul.addr %s269, 128
          %s271 = scalar_lea.hbm %s3, %s270
          %s273 = sshll.u32 [#allocation8], 4
          %s274 = int_to_ptr.vmem [resolvable:$true] %s273
          %276 = dma.hbm_to_vmem [thread:$0]  %s271, 896, %s274, [#allocation9]
        $region20: #{tpu_custom_call.1} parent=11 // pred_fallthru
          _
        // Predicated region
        $region21: #{tpu_custom_call.1} parent=11 // pred_check
          %p277 = pneg %p164
        $region22: #{tpu_custom_call.1} parent=11 // pred_check_branch
          %279 = sbr.rel (%p277) target = $region24
        $region23: #{tpu_custom_call.1} parent=11 // pred_region
          _
        $region24: #{tpu_custom_call.1} parent=11 // pred_fallthru
          _
        // Predicated region
        $region25: #{tpu_custom_call.1} parent=11 // pred_check
          %p280 = pneg %p185
        $region26: #{tpu_custom_call.1} parent=11 // pred_check_branch
          %282 = sbr.rel (%p280) target = $region28
        $region27: #{tpu_custom_call.1} parent=11 // pred_region
          _
        $region28: #{tpu_custom_call.1} parent=11 // pred_fallthru
          _
        // Predicated region
        $region29: #{tpu_custom_call.1} parent=11 // pred_check
          %p283 = pneg %p206
        $region30: #{tpu_custom_call.1} parent=11 // pred_check_branch
          %285 = sbr.rel (%p283) target = $region32
        $region31: #{tpu_custom_call.1} parent=11 // pred_region
          %s287 = ssub.s32 14336, 14336
          %288 = vsyncadd [#allocation9], %s287
          %s289 = sshll.u32 [#allocation10], 4
          %s290 = int_to_ptr.vmem [resolvable:$true] %s289
          %295 = dma.hbm_to_vmem [thread:$0]  %s6, 14336, %s290, [#allocation9], 896, 896, 56
        $region32: #{tpu_custom_call.1} parent=11 // pred_fallthru
          _
      $region12: #{tpu_custom_call.1} parent=5 // pred_fallthru
        _
      %p296 = scmp.lt.s32.totalorder %s23, 2
      // Predicated region
      $region33: #{tpu_custom_call.1} parent=5 // pred_check
        %p297 = pneg %p296
      $region34: #{tpu_custom_call.1} parent=5 // pred_check_branch
        %299 = sbr.rel (%p297) target = $region36
      $region35: #{tpu_custom_call.1} parent=5 // pred_region
        // Predicated region
        $region37: #{tpu_custom_call.1} parent=35 // pred_check
          %p300 = pneg %p57
        $region38: #{tpu_custom_call.1} parent=35 // pred_check_branch
          %302 = sbr.rel (%p300) target = $region40
        $region39: #{tpu_custom_call.1} parent=35 // pred_region
          %s303 = sand.u32 %s47, 1
          %s304 = scalar_lea.sflag [#allocation3], %s303
          %s305 = sand.u32 %s47, 1
          %s306 = smul.addr %s305, 8
          %s307 = scalar_lea.vmem [#allocation2], %s306
          %s309 = ssub.s32 128, 128
          %310 = vsyncadd %s304, %s309
          %s311 = sadd.s32 %s30, %s31
          %s312 = smul.addr %s311, 128
          %s313 = scalar_lea.hbm %s0, %s312
          %s315 = sshll.u32 %s307, 4
          %s316 = int_to_ptr.vmem [resolvable:$true] %s315
          %318 = dma.hbm_to_vmem [thread:$0]  %s313, 128, %s316, %s304
        $region40: #{tpu_custom_call.1} parent=35 // pred_fallthru
          _
        // Predicated region
        $region41: #{tpu_custom_call.1} parent=35 // pred_check
          %p319 = pneg %p85
        $region42: #{tpu_custom_call.1} parent=35 // pred_check_branch
          %321 = sbr.rel (%p319) target = $region44
        $region43: #{tpu_custom_call.1} parent=35 // pred_region
          %s322 = sand.u32 %s23, 1
          %s323 = scalar_lea.sflag [#allocation6], %s322
          %s324 = sand.u32 %s75, 1
          %s325 = smul.addr %s324, 56
          %s326 = scalar_lea.vmem [#allocation5], %s325
          %s328 = ssub.s32 896, 896
          %329 = vsyncadd %s323, %s328
          %s330 = smul.addr %s30, 7
          %s331 = smul.addr %s31, 7
          %s332 = sadd.s32 %s330, %s331
          %s333 = smul.addr %s332, 128
          %s334 = scalar_lea.hbm %s1, %s333
          %s336 = sshll.u32 %s326, 4
          %s337 = int_to_ptr.vmem [resolvable:$true] %s336
          %339 = dma.hbm_to_vmem [thread:$0]  %s334, 896, %s337, %s323
        $region44: #{tpu_custom_call.1} parent=35 // pred_fallthru
          _
      $region36: #{tpu_custom_call.1} parent=5 // pred_fallthru
        _
      %p340 = scmp.le.s32.totalorder 1, %s23
      %p341 = scmp.lt.s32.totalorder %s23, 3
      %p342 = pnand %p340, %p341
      %p343 = pneg %p342
      // Predicated region
      $region45: #{tpu_custom_call.1} parent=5 // pred_check
        _
      $region46: #{tpu_custom_call.1} parent=5 // pred_check_branch
        %345 = sbr.rel (%p342) target = $region48
      $region47: #{tpu_custom_call.1} parent=5 // pred_region
        %s346 = ssub.s32 %s23, 1
        %s347 = sand.u32 %s50, 1
        %s348 = scalar_lea.sflag [#allocation3], %s347
        %s349 = sand.u32 %s50, 1
        %s350 = smul.addr %s349, 8
        %s351 = scalar_lea.vmem [#allocation2], %s350
        // Predicated region
        $region49: #{tpu_custom_call.1} parent=47 // pred_check
          %p352 = pneg %p63
        $region50: #{tpu_custom_call.1} parent=47 // pred_check_branch
          %354 = sbr.rel (%p352) target = $region52
        $region51: #{tpu_custom_call.1} parent=47 // pred_region
          %355 = dma.done %s348, 128
        $region52: #{tpu_custom_call.1} parent=47 // pred_fallthru
          _
        %s356 = sand.u32 %s28, 1
        %s357 = scalar_lea.sflag [#allocation6], %s356
        %s358 = sand.u32 %s78, 1
        %s359 = smul.addr %s358, 56
        %s360 = scalar_lea.vmem [#allocation5], %s359
        // Predicated region
        $region53: #{tpu_custom_call.1} parent=47 // pred_check
          %p361 = pneg %p91
        $region54: #{tpu_custom_call.1} parent=47 // pred_check_branch
          %363 = sbr.rel (%p361) target = $region56
        $region55: #{tpu_custom_call.1} parent=47 // pred_region
          %364 = dma.done %s357, 896
        $region56: #{tpu_custom_call.1} parent=47 // pred_fallthru
          _
        // Predicated region
        $region57: #{tpu_custom_call.1} parent=47 // pred_check
          %p365 = pneg %p117
        $region58: #{tpu_custom_call.1} parent=47 // pred_check_branch
          %367 = sbr.rel (%p365) target = $region60
        $region59: #{tpu_custom_call.1} parent=47 // pred_region
          %368 = dma.done [#allocation6], 896
        $region60: #{tpu_custom_call.1} parent=47 // pred_fallthru
          _
        // Predicated region
        $region61: #{tpu_custom_call.1} parent=47 // pred_check
          %p369 = pneg %p143
        $region62: #{tpu_custom_call.1} parent=47 // pred_check_branch
          %371 = sbr.rel (%p369) target = $region64
        $region63: #{tpu_custom_call.1} parent=47 // pred_region
          %372 = dma.done [#allocation9], 896
        $region64: #{tpu_custom_call.1} parent=47 // pred_fallthru
          _
        // Predicated region
        $region65: #{tpu_custom_call.1} parent=47 // pred_check
          %p373 = pneg %p206
        $region66: #{tpu_custom_call.1} parent=47 // pred_check_branch
          %375 = sbr.rel (%p373) target = $region68
        $region67: #{tpu_custom_call.1} parent=47 // pred_region
          %376 = dma.done [#allocation9], 14336
        $region68: #{tpu_custom_call.1} parent=47 // pred_fallthru
          _
        %s377 = sand.u32 %s50, 1
        %s378 = scalar_lea.sflag [#allocation3], %s377
        %s379 = sand.u32 %s50, 1
        %s380 = smul.addr %s379, 8
        %s381 = scalar_lea.vmem [#allocation2], %s380
        %p382 = pneg %p63
        %p383 = pneg %p60
        %s384 = sand.u32 %s28, 1
        %s385 = scalar_lea.sflag [#allocation6], %s384
        %s386 = sand.u32 %s78, 1
        %s387 = smul.addr %s386, 56
        %s388 = scalar_lea.vmem [#allocation5], %s387
        %p389 = pneg %p91
        %p390 = pneg %p88
        %p391 = pneg %p117
        %p392 = pneg %p114
        %p393 = pneg %p143
        %p394 = pneg %p140
        %p395 = pneg %p164
        %p396 = pneg %p161
        %p397 = pneg %p185
        %p398 = pneg %p182
        %p399 = pneg %p206
        %p400 = pneg %p203
        %p401 = pneg %p234
        %p402 = pneg %p231
        %s403 = sand.u32 %s221, 1
        %s404 = scalar_lea.sflag [#allocation4], %s403
        %s405 = sand.u32 %s221, 1
        %s406 = smul.addr %s405, 56
        %s407 = scalar_lea.vmem [#allocation11], %s406
        %v408 = vld [vmem:[%s360] sm:$0xff]
        %v409 = vld [vmem:[%s360 + $0x8] sm:$0xff]
        %v410 = vld [vmem:[%s360 + $0x10] sm:$0xff]
        %v411 = vld [vmem:[%s360 + $0x18] sm:$0xff]
        %v412 = vld [vmem:[%s360 + $0x20] sm:$0xff]
        %v413 = vld [vmem:[%s360 + $0x28] sm:$0xff]
        %v414 = vld [vmem:[%s360 + $0x30] sm:$0xff]
        %v415 = vld [vmem:[#allocation7] sm:$0xff]
        %v416 = vld [vmem:[#allocation7 + $0x8] sm:$0xff]
        %v417 = vld [vmem:[#allocation7 + $0x10] sm:$0xff]
        %v418 = vld [vmem:[#allocation7 + $0x18] sm:$0xff]
        %v419 = vld [vmem:[#allocation7 + $0x20] sm:$0xff]
        %v420 = vld [vmem:[#allocation7 + $0x28] sm:$0xff]
        %v421 = vld [vmem:[#allocation7 + $0x30] sm:$0xff]
        %v422 = vld [vmem:[#allocation8] sm:$0xff]
        %v423 = vld [vmem:[#allocation8 + $0x8] sm:$0xff]
        %v424 = vld [vmem:[#allocation8 + $0x10] sm:$0xff]
        %v425 = vld [vmem:[#allocation8 + $0x18] sm:$0xff]
        %v426 = vld [vmem:[#allocation8 + $0x20] sm:$0xff]
        %v427 = vld [vmem:[#allocation8 + $0x28] sm:$0xff]
        %v428 = vld [vmem:[#allocation8 + $0x30] sm:$0xff]
        %v429 = vld [vmem:[%s4] sm:$0xff]
        %vm430 = vcmp.gt.f32.partialorder %v429, 0.5
        %v431 = vld [vmem:[%s5] sm:$0xff]
        %v432 = vmul.f32 %v408, 1.442695
        %v433 = vpow.pop %v432
        %v434 = vmul.f32 %v409, 1.442695
        %v435 = vpow.pop %v434
        %v436 = vmul.f32 %v410, 1.442695
        %v437 = vpow.pop %v436
        %v438 = vmul.f32 %v411, 1.442695
        %v439 = vpow.pop %v438
        %v440 = vmul.f32 %v412, 1.442695
        %v441 = vpow.pop %v440
        %v442 = vmul.f32 %v413, 1.442695
        %v443 = vpow.pop %v442
        %v444 = vmul.f32 %v414, 1.442695
        %v445 = vpow.pop %v444
        %v446 = vsel %vm430, 1, 0
        %v447 = vlaneseq
        %v448 = vshrl.u32 %v447, 7
        %v449 = vsub.s32 0, %v448
        %v450 = vrot.slane %v446, %v449
        %v451 = vlaneseq
        %v452 = vshrl.u32 %v451, 7
        %v453 = vsub.s32 1, %v452
        %v454 = vrot.slane %v446, %v453
        %v455 = vlaneseq
        %v456 = vshrl.u32 %v455, 7
        %v457 = vsub.s32 2, %v456
        %v458 = vrot.slane %v446, %v457
        %v459 = vlaneseq
        %v460 = vshrl.u32 %v459, 7
        %v461 = vsub.s32 3, %v460
        %v462 = vrot.slane %v446, %v461
        %v463 = vlaneseq
        %v464 = vshrl.u32 %v463, 7
        %v465 = vsub.s32 4, %v464
        %v466 = vrot.slane %v446, %v465
        %v467 = vlaneseq
        %v468 = vshrl.u32 %v467, 7
        %v469 = vsub.s32 5, %v468
        %v470 = vrot.slane %v446, %v469
        %v471 = vlaneseq
        %v472 = vshrl.u32 %v471, 7
        %v473 = vsub.s32 6, %v472
        %v474 = vrot.slane %v446, %v473
        %vm475 = vcmp.eq.s32.totalorder %v450, 1
        %vm476 = vcmp.eq.s32.totalorder %v454, 1
        %vm477 = vcmp.eq.s32.totalorder %v458, 1
        %vm478 = vcmp.eq.s32.totalorder %v462, 1
        %vm479 = vcmp.eq.s32.totalorder %v466, 1
        %vm480 = vcmp.eq.s32.totalorder %v470, 1
        %vm481 = vcmp.eq.s32.totalorder %v474, 1
        %v482 = vsel %vm475, %v433, %v408
        %v483 = vsel %vm476, %v435, %v409
        %v484 = vsel %vm477, %v437, %v410
        %v485 = vsel %vm478, %v439, %v411
        %v486 = vsel %vm479, %v441, %v412
        %v487 = vsel %vm480, %v443, %v413
        %v488 = vsel %vm481, %v445, %v414
        %v489 = vmul.f32 %v482, %v415
        %v490 = vmul.f32 %v483, %v416
        %v491 = vmul.f32 %v484, %v417
        %v492 = vmul.f32 %v485, %v418
        %v493 = vmul.f32 %v486, %v419
        %v494 = vmul.f32 %v487, %v420
        %v495 = vmul.f32 %v488, %v421
        %v496 = vadd.f32 %v489, %v422
        %v497 = vadd.f32 %v490, %v423
        %v498 = vadd.f32 %v491, %v424
        %v499 = vadd.f32 %v492, %v425
        %v500 = vadd.f32 %v493, %v426
        %v501 = vadd.f32 %v494, %v427
        %v502 = vadd.f32 %v495, %v428
        %v503 = vld [vmem:[%s351] sm:$0xff]
        %v504 = vld [vmem:[#allocation10] sm:$0xff]
        %v505 = vld [vmem:[#allocation10 + $0x8] sm:$0xff]
        %v506 = vld [vmem:[#allocation10 + $0x10] sm:$0xff]
        %v507 = vld [vmem:[#allocation10 + $0x18] sm:$0xff]
        %v508 = vld [vmem:[#allocation10 + $0x20] sm:$0xff]
        %v509 = vld [vmem:[#allocation10 + $0x28] sm:$0xff]
        %v510 = vld [vmem:[#allocation10 + $0x30] sm:$0xff]
        %v511 = vld [vmem:[#allocation10 + $0x38] sm:$0xff]
        %v512 = vld [vmem:[#allocation10 + $0x40] sm:$0xff]
        %v513 = vld [vmem:[#allocation10 + $0x48] sm:$0xff]
        %v514 = vld [vmem:[#allocation10 + $0x50] sm:$0xff]
        %v515 = vld [vmem:[#allocation10 + $0x58] sm:$0xff]
        %v516 = vld [vmem:[#allocation10 + $0x60] sm:$0xff]
        %v517 = vld [vmem:[#allocation10 + $0x68] sm:$0xff]
        %v518 = vld [vmem:[#allocation10 + $0x70] sm:$0xff]
        %v519 = vld [vmem:[#allocation10 + $0x78] sm:$0xff]
        %v520 = vld [vmem:[#allocation10 + $0x80] sm:$0xff]
        %v521 = vld [vmem:[#allocation10 + $0x88] sm:$0xff]
        %v522 = vld [vmem:[#allocation10 + $0x90] sm:$0xff]
        %v523 = vld [vmem:[#allocation10 + $0x98] sm:$0xff]
        %v524 = vld [vmem:[#allocation10 + $0xa0] sm:$0xff]
        %v525 = vld [vmem:[#allocation10 + $0xa8] sm:$0xff]
        %v526 = vld [vmem:[#allocation10 + $0xb0] sm:$0xff]
        %v527 = vld [vmem:[#allocation10 + $0xb8] sm:$0xff]
        %v528 = vld [vmem:[#allocation10 + $0xc0] sm:$0xff]
        %v529 = vld [vmem:[#allocation10 + $0xc8] sm:$0xff]
        %v530 = vld [vmem:[#allocation10 + $0xd0] sm:$0xff]
        %v531 = vld [vmem:[#allocation10 + $0xd8] sm:$0xff]
        %v532 = vld [vmem:[#allocation10 + $0xe0] sm:$0xff]
        %v533 = vld [vmem:[#allocation10 + $0xe8] sm:$0xff]
        %v534 = vld [vmem:[#allocation10 + $0xf0] sm:$0xff]
        %v535 = vld [vmem:[#allocation10 + $0xf8] sm:$0xff]
        %v536 = vld [vmem:[#allocation10 + $0x100] sm:$0xff]
        %v537 = vld [vmem:[#allocation10 + $0x108] sm:$0xff]
        %v538 = vld [vmem:[#allocation10 + $0x110] sm:$0xff]
        %v539 = vld [vmem:[#allocation10 + $0x118] sm:$0xff]
        %v540 = vld [vmem:[#allocation10 + $0x120] sm:$0xff]
        %v541 = vld [vmem:[#allocation10 + $0x128] sm:$0xff]
        %v542 = vld [vmem:[#allocation10 + $0x130] sm:$0xff]
        %v543 = vld [vmem:[#allocation10 + $0x138] sm:$0xff]
        %v544 = vld [vmem:[#allocation10 + $0x140] sm:$0xff]
        %v545 = vld [vmem:[#allocation10 + $0x148] sm:$0xff]
        %v546 = vld [vmem:[#allocation10 + $0x150] sm:$0xff]
        %v547 = vld [vmem:[#allocation10 + $0x158] sm:$0xff]
        %v548 = vld [vmem:[#allocation10 + $0x160] sm:$0xff]
        %v549 = vld [vmem:[#allocation10 + $0x168] sm:$0xff]
        %v550 = vld [vmem:[#allocation10 + $0x170] sm:$0xff]
        %v551 = vld [vmem:[#allocation10 + $0x178] sm:$0xff]
        %v552 = vld [vmem:[#allocation10 + $0x180] sm:$0xff]
        %v553 = vld [vmem:[#allocation10 + $0x188] sm:$0xff]
        %v554 = vld [vmem:[#allocation10 + $0x190] sm:$0xff]
        %v555 = vld [vmem:[#allocation10 + $0x198] sm:$0xff]
        %v556 = vld [vmem:[#allocation10 + $0x1a0] sm:$0xff]
        %v557 = vld [vmem:[#allocation10 + $0x1a8] sm:$0xff]
        %v558 = vld [vmem:[#allocation10 + $0x1b0] sm:$0xff]
        %v559 = vld [vmem:[#allocation10 + $0x1b8] sm:$0xff]
        %v560 = vld [vmem:[#allocation10 + $0x1c0] sm:$0xff]
        %v561 = vld [vmem:[#allocation10 + $0x1c8] sm:$0xff]
        %v562 = vld [vmem:[#allocation10 + $0x1d0] sm:$0xff]
        %v563 = vld [vmem:[#allocation10 + $0x1d8] sm:$0xff]
        %v564 = vld [vmem:[#allocation10 + $0x1e0] sm:$0xff]
        %v565 = vld [vmem:[#allocation10 + $0x1e8] sm:$0xff]
        %v566 = vld [vmem:[#allocation10 + $0x1f0] sm:$0xff]
        %v567 = vld [vmem:[#allocation10 + $0x1f8] sm:$0xff]
        %v568 = vld [vmem:[#allocation10 + $0x200] sm:$0xff]
        %v569 = vld [vmem:[#allocation10 + $0x208] sm:$0xff]
        %v570 = vld [vmem:[#allocation10 + $0x210] sm:$0xff]
        %v571 = vld [vmem:[#allocation10 + $0x218] sm:$0xff]
        %v572 = vld [vmem:[#allocation10 + $0x220] sm:$0xff]
        %v573 = vld [vmem:[#allocation10 + $0x228] sm:$0xff]
        %v574 = vld [vmem:[#allocation10 + $0x230] sm:$0xff]
        %v575 = vld [vmem:[#allocation10 + $0x238] sm:$0xff]
        %v576 = vld [vmem:[#allocation10 + $0x240] sm:$0xff]
        %v577 = vld [vmem:[#allocation10 + $0x248] sm:$0xff]
        %v578 = vld [vmem:[#allocation10 + $0x250] sm:$0xff]
        %v579 = vld [vmem:[#allocation10 + $0x258] sm:$0xff]
        %v580 = vld [vmem:[#allocation10 + $0x260] sm:$0xff]
        %v581 = vld [vmem:[#allocation10 + $0x268] sm:$0xff]
        %v582 = vld [vmem:[#allocation10 + $0x270] sm:$0xff]
        %v583 = vld [vmem:[#allocation10 + $0x278] sm:$0xff]
        %v584 = vld [vmem:[#allocation10 + $0x280] sm:$0xff]
        %v585 = vld [vmem:[#allocation10 + $0x288] sm:$0xff]
        %v586 = vld [vmem:[#allocation10 + $0x290] sm:$0xff]
        %v587 = vld [vmem:[#allocation10 + $0x298] sm:$0xff]
        %v588 = vld [vmem:[#allocation10 + $0x2a0] sm:$0xff]
        %v589 = vld [vmem:[#allocation10 + $0x2a8] sm:$0xff]
        %v590 = vld [vmem:[#allocation10 + $0x2b0] sm:$0xff]
        %v591 = vld [vmem:[#allocation10 + $0x2b8] sm:$0xff]
        %v592 = vld [vmem:[#allocation10 + $0x2c0] sm:$0xff]
        %v593 = vld [vmem:[#allocation10 + $0x2c8] sm:$0xff]
        %v594 = vld [vmem:[#allocation10 + $0x2d0] sm:$0xff]
        %v595 = vld [vmem:[#allocation10 + $0x2d8] sm:$0xff]
        %v596 = vld [vmem:[#allocation10 + $0x2e0] sm:$0xff]
        %v597 = vld [vmem:[#allocation10 + $0x2e8] sm:$0xff]
        %v598 = vld [vmem:[#allocation10 + $0x2f0] sm:$0xff]
        %v599 = vld [vmem:[#allocation10 + $0x2f8] sm:$0xff]
        %v600 = vld [vmem:[#allocation10 + $0x300] sm:$0xff]
        %v601 = vld [vmem:[#allocation10 + $0x308] sm:$0xff]
        %v602 = vld [vmem:[#allocation10 + $0x310] sm:$0xff]
        %v603 = vld [vmem:[#allocation10 + $0x318] sm:$0xff]
        %v604 = vld [vmem:[#allocation10 + $0x320] sm:$0xff]
        %v605 = vld [vmem:[#allocation10 + $0x328] sm:$0xff]
        %v606 = vld [vmem:[#allocation10 + $0x330] sm:$0xff]
        %v607 = vld [vmem:[#allocation10 + $0x338] sm:$0xff]
        %v608 = vld [vmem:[#allocation10 + $0x340] sm:$0xff]
        %v609 = vld [vmem:[#allocation10 + $0x348] sm:$0xff]
        %v610 = vld [vmem:[#allocation10 + $0x350] sm:$0xff]
        %v611 = vld [vmem:[#allocation10 + $0x358] sm:$0xff]
        %v612 = vld [vmem:[#allocation10 + $0x360] sm:$0xff]
        %v613 = vld [vmem:[#allocation10 + $0x368] sm:$0xff]
        %v614 = vld [vmem:[#allocation10 + $0x370] sm:$0xff]
        %v615 = vld [vmem:[#allocation10 + $0x378] sm:$0xff]
        %616 = vmatprep.subr.mxu0 %v505
        %617 = vmatpush1.msra.mxu0 %v504
        %618 = vmatprep.subr.mxu0 %v512
        %619 = vmatpush1.msra.mxu0 %v511
        %620 = vmatprep.subr.mxu0 %v519
        %621 = vmatpush1.msra.mxu0 %v518
        %622 = vmatprep.subr.mxu0 %v526
        %623 = vmatpush1.msra.mxu0 %v525
        %624 = vmatprep.subr.mxu0 %v533
        %625 = vmatpush1.msra.mxu0 %v532
        %626 = vmatprep.subr.mxu0 %v540
        %627 = vmatpush1.msra.mxu0 %v539
        %628 = vmatprep.subr.mxu0 %v547
        %629 = vmatpush1.msra.mxu0 %v546
        %630 = vmatprep.subr.mxu0 %v554
        %631 = vmatpush1.msra.mxu0 %v553
        %632 = vmatprep.subr.mxu0 %v561
        %633 = vmatpush1.msra.mxu0 %v560
        %634 = vmatprep.subr.mxu0 %v568
        %635 = vmatpush1.msra.mxu0 %v567
        %636 = vmatprep.subr.mxu0 %v575
        %637 = vmatpush1.msra.mxu0 %v574
        %638 = vmatprep.subr.mxu0 %v582
        %639 = vmatpush1.msra.mxu0 %v581
        %640 = vmatprep.subr.mxu0 %v589
        %641 = vmatpush1.msra.mxu0 %v588
        %642 = vmatprep.subr.mxu0 %v596
        %643 = vmatpush1.msra.mxu0 %v595
        %644 = vmatprep.subr.mxu0 %v603
        %645 = vmatpush1.msra.mxu0 %v602
        %646 = vmatprep.subr.mxu0 %v610
        %647 = vmatpush1.msra.mxu0 %v609
        %648 = vmatprep.subr.mxu0 0.0
        %649 = vmatpush1.msra.mxu0 0.0
        %650 = vmatprep.subr.mxu0 0.0
        %651 = vmatpush1.msra.mxu0 0.0
        %652 = vmatprep.subr.mxu0 0.0
        %653 = vmatpush1.msra.mxu0 0.0
        %654 = vmatprep.subr.mxu0 0.0
        %655 = vmatpush1.msra.mxu0 0.0
        %656 = vmatprep.subr.mxu0 0.0
        %657 = vmatpush1.msra.mxu0 0.0
        %658 = vmatprep.subr.mxu0 0.0
        %659 = vmatpush1.msra.mxu0 0.0
        %660 = vmatprep.subr.mxu0 0.0
        %661 = vmatpush1.msra.mxu0 0.0
        %662 = vmatprep.subr.mxu0 0.0
        %663 = vmatpush1.msra.mxu0 0.0
        %664 = vmatprep.subr.mxu0 0.0
        %665 = vmatpush1.msra.mxu0 0.0
        %666 = vmatprep.subr.mxu0 0.0
        %667 = vmatpush1.msra.mxu0 0.0
        %668 = vmatprep.subr.mxu0 0.0
        %669 = vmatpush1.msra.mxu0 0.0
        %670 = vmatprep.subr.mxu0 0.0
        %671 = vmatpush1.msra.mxu0 0.0
        %672 = vmatprep.subr.mxu0 0.0
        %673 = vmatpush1.msra.mxu0 0.0
        %674 = vmatprep.subr.mxu0 0.0
        %675 = vmatpush1.msra.mxu0 0.0
        %676 = vmatprep.subr.mxu0 0.0
        %677 = vmatpush1.msra.mxu0 0.0
        %678 = vmatprep.subr.mxu0 0.0
        %679 = vmatpush1.msra.mxu0 0.0
        %680 = vmatprep.mubr.f32.mxu0 0.0
        %681 = vmatmul.mubr.f32.gmra.mrb[0].mxu0 %v503
        %v682 = vpop.f32.mrb[0].mxu0
        %v683 = vadd.f32 0.0, %v682
        %v684 = vpop.f32.mrb[0].mxu0
        %v685 = vadd.f32 0.0, %v684
        %686 = vdwg.mxu0
        %687 = vmatprep.subr.mxu0 %v507
        %688 = vmatpush1.msra.mxu0 %v506
        %689 = vmatprep.subr.mxu0 %v514
        %690 = vmatpush1.msra.mxu0 %v513
        %691 = vmatprep.subr.mxu0 %v521
        %692 = vmatpush1.msra.mxu0 %v520
        %693 = vmatprep.subr.mxu0 %v528
        %694 = vmatpush1.msra.mxu0 %v527
        %695 = vmatprep.subr.mxu0 %v535
        %696 = vmatpush1.msra.mxu0 %v534
        %697 = vmatprep.subr.mxu0 %v542
        %698 = vmatpush1.msra.mxu0 %v541
        %699 = vmatprep.subr.mxu0 %v549
        %700 = vmatpush1.msra.mxu0 %v548
        %701 = vmatprep.subr.mxu0 %v556
        %702 = vmatpush1.msra.mxu0 %v555
        %703 = vmatprep.subr.mxu0 %v563
        %704 = vmatpush1.msra.mxu0 %v562
        %705 = vmatprep.subr.mxu0 %v570
        %706 = vmatpush1.msra.mxu0 %v569
        %707 = vmatprep.subr.mxu0 %v577
        %708 = vmatpush1.msra.mxu0 %v576
        %709 = vmatprep.subr.mxu0 %v584
        %710 = vmatpush1.msra.mxu0 %v583
        %711 = vmatprep.subr.mxu0 %v591
        %712 = vmatpush1.msra.mxu0 %v590
        %713 = vmatprep.subr.mxu0 %v598
        %714 = vmatpush1.msra.mxu0 %v597
        %715 = vmatprep.subr.mxu0 %v605
        %716 = vmatpush1.msra.mxu0 %v604
        %717 = vmatprep.subr.mxu0 %v612
        %718 = vmatpush1.msra.mxu0 %v611
        %719 = vmatprep.subr.mxu0 0.0
        %720 = vmatpush1.msra.mxu0 0.0
        %721 = vmatprep.subr.mxu0 0.0
        %722 = vmatpush1.msra.mxu0 0.0
        %723 = vmatprep.subr.mxu0 0.0
        %724 = vmatpush1.msra.mxu0 0.0
        %725 = vmatprep.subr.mxu0 0.0
        %726 = vmatpush1.msra.mxu0 0.0
        %727 = vmatprep.subr.mxu0 0.0
        %728 = vmatpush1.msra.mxu0 0.0
        %729 = vmatprep.subr.mxu0 0.0
        %730 = vmatpush1.msra.mxu0 0.0
        %731 = vmatprep.subr.mxu0 0.0
        %732 = vmatpush1.msra.mxu0 0.0
        %733 = vmatprep.subr.mxu0 0.0
        %734 = vmatpush1.msra.mxu0 0.0
        %735 = vmatprep.subr.mxu0 0.0
        %736 = vmatpush1.msra.mxu0 0.0
        %737 = vmatprep.subr.mxu0 0.0
        %738 = vmatpush1.msra.mxu0 0.0
        %739 = vmatprep.subr.mxu0 0.0
        %740 = vmatpush1.msra.mxu0 0.0
        %741 = vmatprep.subr.mxu0 0.0
        %742 = vmatpush1.msra.mxu0 0.0
        %743 = vmatprep.subr.mxu0 0.0
        %744 = vmatpush1.msra.mxu0 0.0
        %745 = vmatprep.subr.mxu0 0.0
        %746 = vmatpush1.msra.mxu0 0.0
        %747 = vmatprep.subr.mxu0 0.0
        %748 = vmatpush1.msra.mxu0 0.0
        %749 = vmatprep.subr.mxu0 0.0
        %750 = vmatpush1.msra.mxu0 0.0
        %751 = vmatprep.mubr.f32.mxu0 0.0
        %752 = vmatmul.mubr.f32.gmra.mrb[0].mxu0 %v503
        %v753 = vpop.f32.mrb[0].mxu0
        %v754 = vadd.f32 0.0, %v753
        %v755 = vpop.f32.mrb[0].mxu0
        %v756 = vadd.f32 0.0, %v755
        %757 = vdwg.mxu0
        %758 = vmatprep.subr.mxu0 %v509
        %759 = vmatpush1.msra.mxu0 %v508
        %760 = vmatprep.subr.mxu0 %v516
        %761 = vmatpush1.msra.mxu0 %v515
        %762 = vmatprep.subr.mxu0 %v523
        %763 = vmatpush1.msra.mxu0 %v522
        %764 = vmatprep.subr.mxu0 %v530
        %765 = vmatpush1.msra.mxu0 %v529
        %766 = vmatprep.subr.mxu0 %v537
        %767 = vmatpush1.msra.mxu0 %v536
        %768 = vmatprep.subr.mxu0 %v544
        %769 = vmatpush1.msra.mxu0 %v543
        %770 = vmatprep.subr.mxu0 %v551
        %771 = vmatpush1.msra.mxu0 %v550
        %772 = vmatprep.subr.mxu0 %v558
        %773 = vmatpush1.msra.mxu0 %v557
        %774 = vmatprep.subr.mxu0 %v565
        %775 = vmatpush1.msra.mxu0 %v564
        %776 = vmatprep.subr.mxu0 %v572
        %777 = vmatpush1.msra.mxu0 %v571
        %778 = vmatprep.subr.mxu0 %v579
        %779 = vmatpush1.msra.mxu0 %v578
        %780 = vmatprep.subr.mxu0 %v586
        %781 = vmatpush1.msra.mxu0 %v585
        %782 = vmatprep.subr.mxu0 %v593
        %783 = vmatpush1.msra.mxu0 %v592
        %784 = vmatprep.subr.mxu0 %v600
        %785 = vmatpush1.msra.mxu0 %v599
        %786 = vmatprep.subr.mxu0 %v607
        %787 = vmatpush1.msra.mxu0 %v606
        %788 = vmatprep.subr.mxu0 %v614
        %789 = vmatpush1.msra.mxu0 %v613
        %790 = vmatprep.subr.mxu0 0.0
        %791 = vmatpush1.msra.mxu0 0.0
        %792 = vmatprep.subr.mxu0 0.0
        %793 = vmatpush1.msra.mxu0 0.0
        %794 = vmatprep.subr.mxu0 0.0
        %795 = vmatpush1.msra.mxu0 0.0
        %796 = vmatprep.subr.mxu0 0.0
        %797 = vmatpush1.msra.mxu0 0.0
        %798 = vmatprep.subr.mxu0 0.0
        %799 = vmatpush1.msra.mxu0 0.0
        %800 = vmatprep.subr.mxu0 0.0
        %801 = vmatpush1.msra.mxu0 0.0
        %802 = vmatprep.subr.mxu0 0.0
        %803 = vmatpush1.msra.mxu0 0.0
        %804 = vmatprep.subr.mxu0 0.0
        %805 = vmatpush1.msra.mxu0 0.0
        %806 = vmatprep.subr.mxu0 0.0
        %807 = vmatpush1.msra.mxu0 0.0
        %808 = vmatprep.subr.mxu0 0.0
        %809 = vmatpush1.msra.mxu0 0.0
        %810 = vmatprep.subr.mxu0 0.0
        %811 = vmatpush1.msra.mxu0 0.0
        %812 = vmatprep.subr.mxu0 0.0
        %813 = vmatpush1.msra.mxu0 0.0
        %814 = vmatprep.subr.mxu0 0.0
        %815 = vmatpush1.msra.mxu0 0.0
        %816 = vmatprep.subr.mxu0 0.0
        %817 = vmatpush1.msra.mxu0 0.0
        %818 = vmatprep.subr.mxu0 0.0
        %819 = vmatpush1.msra.mxu0 0.0
        %820 = vmatprep.subr.mxu0 0.0
        %821 = vmatpush1.msra.mxu0 0.0
        %822 = vmatprep.mubr.f32.mxu0 0.0
        %823 = vmatmul.mubr.f32.gmra.mrb[0].mxu0 %v503
        %v824 = vpop.f32.mrb[0].mxu0
        %v825 = vadd.f32 0.0, %v824
        %v826 = vpop.f32.mrb[0].mxu0
        %v827 = vadd.f32 0.0, %v826
        %828 = vdwg.mxu0
        %829 = vmatprep.subr.mxu0 0.0
        %830 = vmatpush1.msra.mxu0 %v510
        %831 = vmatprep.subr.mxu0 0.0
        %832 = vmatpush1.msra.mxu0 %v517
        %833 = vmatprep.subr.mxu0 0.0
        %834 = vmatpush1.msra.mxu0 %v524
        %835 = vmatprep.subr.mxu0 0.0
        %836 = vmatpush1.msra.mxu0 %v531
        %837 = vmatprep.subr.mxu0 0.0
        %838 = vmatpush1.msra.mxu0 %v538
        %839 = vmatprep.subr.mxu0 0.0
        %840 = vmatpush1.msra.mxu0 %v545
        %841 = vmatprep.subr.mxu0 0.0
        %842 = vmatpush1.msra.mxu0 %v552
        %843 = vmatprep.subr.mxu0 0.0
        %844 = vmatpush1.msra.mxu0 %v559
        %845 = vmatprep.subr.mxu0 0.0
        %846 = vmatpush1.msra.mxu0 %v566
        %847 = vmatprep.subr.mxu0 0.0
        %848 = vmatpush1.msra.mxu0 %v573
        %849 = vmatprep.subr.mxu0 0.0
        %850 = vmatpush1.msra.mxu0 %v580
        %851 = vmatprep.subr.mxu0 0.0
        %852 = vmatpush1.msra.mxu0 %v587
        %853 = vmatprep.subr.mxu0 0.0
        %854 = vmatpush1.msra.mxu0 %v594
        %855 = vmatprep.subr.mxu0 0.0
        %856 = vmatpush1.msra.mxu0 %v601
        %857 = vmatprep.subr.mxu0 0.0
        %858 = vmatpush1.msra.mxu0 %v608
        %859 = vmatprep.subr.mxu0 0.0
        %860 = vmatpush1.msra.mxu0 %v615
        %861 = vmatprep.subr.mxu0 0.0
        %862 = vmatpush1.msra.mxu0 0.0
        %863 = vmatprep.subr.mxu0 0.0
        %864 = vmatpush1.msra.mxu0 0.0
        %865 = vmatprep.subr.mxu0 0.0
        %866 = vmatpush1.msra.mxu0 0.0
        %867 = vmatprep.subr.mxu0 0.0
        %868 = vmatpush1.msra.mxu0 0.0
        %869 = vmatprep.subr.mxu0 0.0
        %870 = vmatpush1.msra.mxu0 0.0
        %871 = vmatprep.subr.mxu0 0.0
        %872 = vmatpush1.msra.mxu0 0.0
        %873 = vmatprep.subr.mxu0 0.0
        %874 = vmatpush1.msra.mxu0 0.0
        %875 = vmatprep.subr.mxu0 0.0
        %876 = vmatpush1.msra.mxu0 0.0
        %877 = vmatprep.subr.mxu0 0.0
        %878 = vmatpush1.msra.mxu0 0.0
        %879 = vmatprep.subr.mxu0 0.0
        %880 = vmatpush1.msra.mxu0 0.0
        %881 = vmatprep.subr.mxu0 0.0
        %882 = vmatpush1.msra.mxu0 0.0
        %883 = vmatprep.subr.mxu0 0.0
        %884 = vmatpush1.msra.mxu0 0.0
        %885 = vmatprep.subr.mxu0 0.0
        %886 = vmatpush1.msra.mxu0 0.0
        %887 = vmatprep.subr.mxu0 0.0
        %888 = vmatpush1.msra.mxu0 0.0
        %889 = vmatprep.subr.mxu0 0.0
        %890 = vmatpush1.msra.mxu0 0.0
        %891 = vmatprep.subr.mxu0 0.0
        %892 = vmatpush1.msra.mxu0 0.0
        %893 = vmatprep.mubr.f32.mxu0 0.0
        %894 = vmatmul.mubr.f32.gmra.mrb[0].mxu0 %v503
        %v895 = vpop.f32.mrb[0].mxu0
        %v896 = vadd.f32 0.0, %v895
        %v897 = vpop.f32.mrb[0].mxu0
        %898 = vdwg.mxu0
        %v899 = vsub.f32 %v496, 0.7853982
        %v900 = vsub.f32 %v497, 0.7853982
        %v901 = vsub.f32 %v498, 0.7853982
        %v902 = vsub.f32 %v499, 0.7853982
        %v903 = vsub.f32 %v500, 0.7853982
        %v904 = vsub.f32 %v501, 0.7853982
        %v905 = vsub.f32 %v502, 0.7853982
        %v906 = vmul.f32 %v899, 0.31830987
        %v907 = vmul.f32 %v900, 0.31830987
        %v908 = vmul.f32 %v901, 0.31830987
        %v909 = vmul.f32 %v902, 0.31830987
        %v910 = vmul.f32 %v903, 0.31830987
        %v911 = vmul.f32 %v904, 0.31830987
        %v912 = vmul.f32 %v905, 0.31830987
        %v913 = vadd.f32 %v906, 0.0
        %v914 = vadd.f32 %v907, 0.0
        %v915 = vadd.f32 %v908, 0.0
        %v916 = vadd.f32 %v909, 0.0
        %v917 = vadd.f32 %v910, 0.0
        %v918 = vadd.f32 %v911, 0.0
        %v919 = vadd.f32 %v912, 0.0
        %v920 = vfloor.f32 %v913
        %v921 = vfloor.f32 %v914
        %v922 = vfloor.f32 %v915
        %v923 = vfloor.f32 %v916
        %v924 = vfloor.f32 %v917
        %v925 = vfloor.f32 %v918
        %v926 = vfloor.f32 %v919
        %v927 = vmul.f32 %v920, 3.1415927
        %v928 = vmul.f32 %v921, 3.1415927
        %v929 = vmul.f32 %v922, 3.1415927
        %v930 = vmul.f32 %v923, 3.1415927
        %v931 = vmul.f32 %v924, 3.1415927
        %v932 = vmul.f32 %v925, 3.1415927
        %v933 = vmul.f32 %v926, 3.1415927
        %v934 = vmul.f32 %v683, 3.1415927
        %v935 = vmul.f32 %v685, 3.1415927
        %v936 = vmul.f32 %v754, 3.1415927
        %v937 = vmul.f32 %v756, 3.1415927
        %v938 = vmul.f32 %v825, 3.1415927
        %v939 = vmul.f32 %v827, 3.1415927
        %v940 = vmul.f32 %v896, 3.1415927
        %v941 = vsub.f32 %v934, %v927
        %v942 = vsub.f32 %v935, %v928
        %v943 = vsub.f32 %v936, %v929
        %v944 = vsub.f32 %v937, %v930
        %v945 = vsub.f32 %v938, %v931
        %v946 = vsub.f32 %v939, %v932
        %v947 = vsub.f32 %v940, %v933
        %v949 = vlaneseq
        %v950 = vshrl.u32 %v949, 7
        %v951 = vsub.s32 0, %v950
        %v952 = vrot.slane %v431, %v951
        %v953 = vlaneseq
        %v954 = vshrl.u32 %v953, 7
        %v955 = vsub.s32 1, %v954
        %v956 = vrot.slane %v431, %v955
        %v957 = vlaneseq
        %v958 = vshrl.u32 %v957, 7
        %v959 = vsub.s32 2, %v958
        %v960 = vrot.slane %v431, %v959
        %v961 = vlaneseq
        %v962 = vshrl.u32 %v961, 7
        %v963 = vsub.s32 3, %v962
        %v964 = vrot.slane %v431, %v963
        %v965 = vlaneseq
        %v966 = vshrl.u32 %v965, 7
        %v967 = vsub.s32 4, %v966
        %v968 = vrot.slane %v431, %v967
        %v969 = vlaneseq
        %v970 = vshrl.u32 %v969, 7
        %v971 = vsub.s32 5, %v970
        %v972 = vrot.slane %v431, %v971
        %v973 = vlaneseq
        %v974 = vshrl.u32 %v973, 7
        %v975 = vsub.s32 6, %v974
        %v976 = vrot.slane %v431, %v975
        %v984 = vmul.f32 %v952, %v941
        %v985 = vmul.f32 %v956, %v942
        %v986 = vmul.f32 %v960, %v943
        %v987 = vmul.f32 %v964, %v944
        %v988 = vmul.f32 %v968, %v945
        %v989 = vmul.f32 %v972, %v946
        %v990 = vmul.f32 %v976, %v947
        %v991 = vadd.f32 %v496, %v984
        %v992 = vadd.f32 %v497, %v985
        %v993 = vadd.f32 %v498, %v986
        %v994 = vadd.f32 %v499, %v987
        %v995 = vadd.f32 %v500, %v988
        %v996 = vadd.f32 %v501, %v989
        %v997 = vadd.f32 %v502, %v990
        %998 = vst [vmem:[%s407] sm:$0xff] %v991
        %999 = vst [vmem:[%s407 + $0x8] sm:$0xff] %v992
        %1000 = vst [vmem:[%s407 + $0x10] sm:$0xff] %v993
        %1001 = vst [vmem:[%s407 + $0x18] sm:$0xff] %v994
        %1002 = vst [vmem:[%s407 + $0x20] sm:$0xff] %v995
        %1003 = vst [vmem:[%s407 + $0x28] sm:$0xff] %v996
        %1004 = vst [vmem:[%s407 + $0x30] sm:$0xff] %v997
        %s1005 = sand.u32 %s221, 1
        %s1006 = scalar_lea.sflag [#allocation4], %s1005
        %s1007 = sand.u32 %s221, 1
        %s1008 = smul.addr %s1007, 56
        %s1009 = scalar_lea.vmem [#allocation11], %s1008
        // Predicated region
        $region69: #{tpu_custom_call.1} parent=47 // pred_check
          %p1010 = pneg %p231
        $region70: #{tpu_custom_call.1} parent=47 // pred_check_branch
          %1012 = sbr.rel (%p1010) target = $region72
        $region71: #{tpu_custom_call.1} parent=47 // pred_region
          %s1014 = ssub.s32 896, 896
          %1015 = vsyncadd %s1006, %s1014
          %s1016 = smul.addr %s32, 7
          %s1017 = smul.addr %s33, 7
          %s1018 = sadd.s32 %s1016, %s1017
          %s1019 = smul.addr %s1018, 128
          %s1020 = scalar_lea.hbm %s7, %s1019
          %s1022 = sshll.u32 %s1009, 4
          %s1023 = int_to_ptr.vmem [resolvable:$true] %s1022
          %1025 = dma.vmem_to_hbm [thread:$0]  %s1023, 896, %s1020, %s1006
        $region72: #{tpu_custom_call.1} parent=47 // pred_fallthru
          _
      $region48: #{tpu_custom_call.1} parent=5 // pred_fallthru
        _
      %p1026 = scmp.le.s32.totalorder 2, %s23
      // Predicated region
      $region73: #{tpu_custom_call.1} parent=5 // pred_check
        %p1027 = pneg %p1026
      $region74: #{tpu_custom_call.1} parent=5 // pred_check_branch
        %1029 = sbr.rel (%p1027) target = $region76
      $region75: #{tpu_custom_call.1} parent=5 // pred_region
        %s1030 = ssub.s32 %s23, 2
        // Predicated region
        $region77: #{tpu_custom_call.1} parent=75 // pred_check
          %p1031 = pneg %p237
        $region78: #{tpu_custom_call.1} parent=75 // pred_check_branch
          %1033 = sbr.rel (%p1031) target = $region80
        $region79: #{tpu_custom_call.1} parent=75 // pred_region
          %s1034 = sand.u32 %s222, 1
          %s1035 = scalar_lea.sflag [#allocation4], %s1034
          %s1036 = sand.u32 %s222, 1
          %s1037 = smul.addr %s1036, 56
          %s1038 = scalar_lea.vmem [#allocation11], %s1037
          %1039 = dma.done %s1035, 896
        $region80: #{tpu_custom_call.1} parent=75 // pred_fallthru
          _
      $region76: #{tpu_custom_call.1} parent=5 // pred_fallthru
        _
    $region6: #{tpu_custom_call.1} parent=1 // loop_footer
      %s27 = sadd.s32 1, %s23
    $region7: #{tpu_custom_call.1} parent=1 // loop_footer_branch
      %22 = sbr.rel target = $region3
    $region8: #{tpu_custom_call.1} parent=1 // loop_exit
      _
    %1040 = vsyncpa [#allocation3], 1
    %s1041 = scalar_lea.sflag [#allocation3], 1
    %1042 = vsyncpa %s1041, 1
    %1043 = vsyncpa [#allocation6], 1
    %s1044 = scalar_lea.sflag [#allocation6], 1
    %1045 = vsyncpa %s1044, 1
    %1046 = vsyncpa [#allocation9], 1
    %1047 = vsyncpa [#allocation4], 1
    %s1048 = scalar_lea.sflag [#allocation4], 1
    %1049 = vsyncpa %s1048, 1

</llo_original>
